<compile_context>
chip_gen: v7x
topology: tpu7x:2x2x1
jax: 0.10.0
libtpu: 0.0.40
codegen_flags: <defaults>
</compile_context>

<pallas_src>
import jax
import jax.numpy as jnp
from jax.experimental import pallas as pl
from jax.experimental.pallas import tpu as pltpu


_LANE = 128     # vreg lane width: pad K/N to this for lane-dense loads/stores.
_SUBLANE = 8    # vreg sublane count: pad M (rows) to this.
_TM = 512       # M tile for the batched path (fits v7x 64 MiB VMEM with margin).


def _round_up(n, m):
    return ((n + m - 1) // m) * m


def _linear_kernel(x_ref, w_ref, b_ref, o_ref):
    # Lane-dense MXU matmul with f32 accumulation + resident bias-row add.
    acc = jnp.dot(x_ref[...], w_ref[...], preferred_element_type=jnp.float32)
    o_ref[...] = (acc + b_ref[...]).astype(o_ref.dtype)


def prepare_sleepy_linear_params(weight, bias):
    """One-time parameter staging (analogue of SleepyModule waking the wrapped
    module onto the active device).  Transposes PyTorch's (N, K) weight to
    (K, N) and zero-pads K/N to the 128-lane boundary so neither a transpose
    nor a masked partial store ever appears in the per-call hot path."""
    N, K = weight.shape
    K_pad = _round_up(K, _LANE)
    N_pad = _round_up(N, _LANE)
    w_t = jnp.zeros((K_pad, N_pad), weight.dtype).at[:K, :N].set(weight.T)
    b_row = jnp.zeros((1, N_pad), bias.dtype).at[0, :N].set(bias)
    return w_t, b_row, N


def sleepy_linear_forward(x, w_padded, b_padded, n_out):
    """Pallas equivalent of SleepyModule(Linear(K, n_out)).forward(x).

    x:        (..., K) float32
    w_padded: (K_pad, N_pad) float32   (pre-transposed, zero-padded, staged once)
    b_padded: (1, N_pad) float32
    returns   (..., n_out) float32
    """
    *lead, K = x.shape
    K_pad, N_pad = w_padded.shape
    M = 1
    for d in lead:
        M *= d
    x2d = x.reshape(M, K)

    if M <= _TM:
        # Latency-bound small-M path: no grid, no index_maps — one full-block
        # call with all operands resident in VMEM.
        M_pad = _round_up(max(M, _SUBLANE), _SUBLANE)
        if (M_pad, K_pad) != (M, K):
            x_p = jnp.zeros((M_pad, K_pad), x.dtype).at[:M, :K].set(x2d)
        else:
            x_p = x2d
        out = pl.pallas_call(
            _linear_kernel,
            out_shape=jax.ShapeDtypeStruct((M_pad, N_pad), x.dtype),
            in_specs=[
                pl.BlockSpec(memory_space=pltpu.MemorySpace.VMEM),
                pl.BlockSpec(memory_space=pltpu.MemorySpace.VMEM),
                pl.BlockSpec(memory_space=pltpu.MemorySpace.VMEM),
            ],
            out_specs=pl.BlockSpec(memory_space=pltpu.MemorySpace.VMEM),
        )(x_p, w_padded, b_padded)
    else:
        # Batched path: tile M with a parallel grid axis (auto-pipelined;
        # sharded across the 2 TensorCores on v7x); weight/bias stay resident.
        M_pad = _round_up(M, _TM)
        if (M_pad, K_pad) != (M, K):
            x_p = jnp.zeros((M_pad, K_pad), x.dtype).at[:M, :K].set(x2d)
        else:
            x_p = x2d
        out = pl.pallas_call(
            _linear_kernel,
            out_shape=jax.ShapeDtypeStruct((M_pad, N_pad), x.dtype),
            grid=(M_pad // _TM,),
            in_specs=[
                pl.BlockSpec((_TM, K_pad), lambda i: (i, 0)),
                pl.BlockSpec((K_pad, N_pad), lambda i: (0, 0)),
                pl.BlockSpec((1, N_pad), lambda i: (0, 0)),
            ],
            out_specs=pl.BlockSpec((_TM, N_pad), lambda i: (i, 0)),
            compiler_params=pltpu.CompilerParams(
                dimension_semantics=("parallel",),
                vmem_limit_bytes=32 * 1024 * 1024,  # v7x-safe budget
            ),
        )(x_p, w_padded, b_padded)

    return out[:M, :n_out].reshape(*lead, n_out)


def _reference_forward(x, weight, bias):
    # Pure-JAX reference of the wrapped Linear (what SleepyModule delegates to).
    return jnp.einsum("...k,nk->...n", x, weight,
                      precision=jax.lax.Precision.HIGHEST) + bias


if __name__ == "__main__":
    key = jax.random.PRNGKey(0)
    k_x, k_w, k_b = jax.random.split(key, 3)

    batch, seq, hidden = 2, 8, 32

    x = jax.random.normal(k_x, (batch, seq, hidden), dtype=jnp.float32)
    # Deterministic synthetic Linear(hidden, hidden) parameters.
    weight = jax.random.normal(k_w, (hidden, hidden), dtype=jnp.float32) * 0.05
    bias = jax.random.normal(k_b, (hidden,), dtype=jnp.float32) * 0.05

    # One-time parameter staging — outside the per-call hot path.
    w_padded, b_padded, n_out = prepare_sleepy_linear_params(weight, bias)

    # Small-M (gridless) path — the literal SleepyModule-sized workload.
    y = sleepy_linear_forward(x, w_padded, b_padded, n_out)
    y = jax.block_until_ready(y)
    y_ref = _reference_forward(x, weight, bias)
    assert y.shape == (batch, seq, hidden)
    assert jnp.allclose(y, y_ref, atol=1e-5, rtol=1e-5)

    # Batched (M-tiled, parallel-grid) path.
    x_big = jax.random.normal(k_x, (48, 16, hidden), dtype=jnp.float32)  # M=768 > _TM
    y_big = sleepy_linear_forward(x_big, w_padded, b_padded, n_out)
    y_big = jax.block_until_ready(y_big)
    y_big_ref = _reference_forward(x_big, weight, bias)
    assert y_big.shape == (48, 16, hidden)
    assert jnp.allclose(y_big, y_big_ref, atol=1e-4, rtol=1e-4)

    print("KERNEL_OK")
</pallas_src>

<mosaic_0001>
module attributes {stable_mosaic.version = 11 : i64} {
  func.func @_linear_kernel(%arg0: memref<16x128xf32, #tpu.memory_space<vmem>>, %arg1: memref<128x128xf32, #tpu.memory_space<vmem>>, %arg2: memref<1x128xf32, #tpu.memory_space<vmem>>, %arg3: memref<16x128xf32, #tpu.memory_space<vmem>>) attributes {dimension_semantics = [], scalar_prefetch = 0 : i64, scratch_operands = 0 : i64, tpu.core_type = #tpu.core_type<tc>} {
    %c0 = arith.constant 0 : index
    %c0_0 = arith.constant 0 : index
    %0 = vector.load %arg0[%c0, %c0_0] : memref<16x128xf32, #tpu.memory_space<vmem>>, vector<16x128xf32>
    %c0_1 = arith.constant 0 : index
    %c0_2 = arith.constant 0 : index
    %1 = vector.load %arg1[%c0_1, %c0_2] : memref<128x128xf32, #tpu.memory_space<vmem>>, vector<128x128xf32>
    %cst = arith.constant dense<0.000000e+00> : vector<16x128xf32>
    %2 = tpu.matmul %0, %1, %cst {dimension_numbers = #tpu.dot_dimension_numbers<[1], [0], [0], [1], [0, 0, 1, 1], [], []>} : vector<16x128xf32>, vector<128x128xf32>, vector<16x128xf32> -> vector<16x128xf32>
    %c0_3 = arith.constant 0 : index
    %c0_4 = arith.constant 0 : index
    %3 = vector.load %arg2[%c0_3, %c0_4] : memref<1x128xf32, #tpu.memory_space<vmem>>, vector<1x128xf32>
    %4 = vector.broadcast %3 : vector<1x128xf32> to vector<16x128xf32>
    %5 = arith.addf %2, %4 : vector<16x128xf32>
    %c0_5 = arith.constant 0 : index
    %c0_6 = arith.constant 0 : index
    %6 = vector.load %arg3[%c0_5, %c0_6] : memref<16x128xf32, #tpu.memory_space<vmem>>, vector<16x128xf32>
    tpu.vector_store %arg3[%c0_5, %c0_6], %5 {strides = array<i32>} : memref<16x128xf32, #tpu.memory_space<vmem>>, vector<16x128xf32>,
    return
  }
}

</mosaic_0001>

<llo_original>
// kernel: tpu_custom_call.1
$region0: #{tpu_custom_call.1}
  #allocation0 [shape = 'u32[]', space=smem, size = 0x4, offset = 0x4, fixed_abs, tag = 'smem constant byte address 0x4 - core index']
  #allocation1 [shape = 'u32[144,128]{1,0:T(1,128)}', space=vmem, size = 0x12000, scoped, tag = 'internal scratch']
  %s0 = inlined_call_operand.hbm [shape: f32[16,128], index: 0, kind: input, shape index: {}]
  %s1 = inlined_call_operand.hbm [shape: f32[128,128], index: 1, kind: input, shape index: {}]
  %s2 = inlined_call_operand.vmem [shape: f32[1,128], index: 2, kind: input, shape index: {}]
  %s3 = inlined_call_operand.hbm [shape: f32[16,128], index: 3, kind: output, shape index: {}]
  %s4 = sld [smem:[#allocation0]]
  $region30: #{tpu_custom_call.1} parent=0
    _
  %s6 = ssub.s32 1, %s4
  %s7 = scalar_select 0, %s6, %s4
  $region1: #{tpu_custom_call.1} parent=0
    #allocation2 [shape = 'u8[8192]{0}', space=vmem, size = 0x2000, scoped, tag = 'input window, operand 0, single buffered']
    #allocation3 [shape = 's32[1]{0}', space=sflag, size = 0x4, scoped, tag = 'scoped memory for tpu_custom_call.1']
    #allocation4 [shape = 's32[1]{0}', space=sflag, size = 0x4, scoped, tag = 'scoped memory for tpu_custom_call.1']
    #allocation5 [shape = 'u8[65536]{0}', space=vmem, size = 0x10000, scoped, tag = 'input window, operand 1, single buffered']
    #allocation6 [shape = 's32[1]{0}', space=sflag, size = 0x4, scoped, tag = 'scoped memory for tpu_custom_call.1']
    #allocation7 [shape = 'u8[8192]{0}', space=vmem, size = 0x2000, scoped, tag = 'output window, operand 0, single buffered']
    %8 = vsyncpa [#allocation3], 0
    %9 = vsyncpa [#allocation6], 0
    %10 = vsyncpa [#allocation4], 0
    // Predicated region
    $region2: #{tpu_custom_call.1} parent=1 // pred_check
      _
    $region3: #{tpu_custom_call.1} parent=1 // pred_check_branch
      %12 = sbr.rel (0) target = $region5
    $region4: #{tpu_custom_call.1} parent=1 // pred_region
      %s14 = ssub.s32 256, 256
      %15 = vsyncadd [#allocation3], %s14
      %s16 = sshll.u32 [#allocation2], 4
      %s17 = int_to_ptr.vmem [resolvable:$true] %s16
      %22 = dma.hbm_to_vmem [thread:$0]  %s0, 256, %s17, [#allocation3], 128, 128, 8
    $region5: #{tpu_custom_call.1} parent=1 // pred_fallthru
      _
    // Predicated region
    $region6: #{tpu_custom_call.1} parent=1 // pred_check
      _
    $region7: #{tpu_custom_call.1} parent=1 // pred_check_branch
      %24 = sbr.rel (0) target = $region9
    $region8: #{tpu_custom_call.1} parent=1 // pred_region
      %s26 = ssub.s32 2048, 2048
      %27 = vsyncadd [#allocation6], %s26
      %s28 = sshll.u32 [#allocation5], 4
      %s29 = int_to_ptr.vmem [resolvable:$true] %s28
      %34 = dma.hbm_to_vmem [thread:$0]  %s1, 2048, %s29, [#allocation6], 128, 128, 8
    $region9: #{tpu_custom_call.1} parent=1 // pred_fallthru
      _
    // Predicated region
    $region10: #{tpu_custom_call.1} parent=1 // pred_check
      _
    $region11: #{tpu_custom_call.1} parent=1 // pred_check_branch
      %36 = sbr.rel (0) target = $region13
    $region12: #{tpu_custom_call.1} parent=1 // pred_region
      _
    $region13: #{tpu_custom_call.1} parent=1 // pred_fallthru
      _
    // Predicated region
    $region14: #{tpu_custom_call.1} parent=1 // pred_check
      _
    $region15: #{tpu_custom_call.1} parent=1 // pred_check_branch
      %38 = sbr.rel (0) target = $region17
    $region16: #{tpu_custom_call.1} parent=1 // pred_region
      %39 = dma.done [#allocation3], 256
    $region17: #{tpu_custom_call.1} parent=1 // pred_fallthru
      _
    // Predicated region
    $region18: #{tpu_custom_call.1} parent=1 // pred_check
      _
    $region19: #{tpu_custom_call.1} parent=1 // pred_check_branch
      %41 = sbr.rel (0) target = $region21
    $region20: #{tpu_custom_call.1} parent=1 // pred_region
      %42 = dma.done [#allocation6], 2048
    $region21: #{tpu_custom_call.1} parent=1 // pred_fallthru
      _
    %v43 = vld [vmem:[#allocation2] sm:$0xff]
    %v44 = vld [vmem:[#allocation2 + $0x8] sm:$0xff]
    %v45 = vld [vmem:[#allocation5] sm:$0xff]
    %v46 = vld [vmem:[#allocation5 + $0x8] sm:$0xff]
    %v47 = vld [vmem:[#allocation5 + $0x10] sm:$0xff]
    %v48 = vld [vmem:[#allocation5 + $0x18] sm:$0xff]
    %v49 = vld [vmem:[#allocation5 + $0x20] sm:$0xff]
    %v50 = vld [vmem:[#allocation5 + $0x28] sm:$0xff]
    %v51 = vld [vmem:[#allocation5 + $0x30] sm:$0xff]
    %v52 = vld [vmem:[#allocation5 + $0x38] sm:$0xff]
    %v53 = vld [vmem:[#allocation5 + $0x40] sm:$0xff]
    %v54 = vld [vmem:[#allocation5 + $0x48] sm:$0xff]
    %v55 = vld [vmem:[#allocation5 + $0x50] sm:$0xff]
    %v56 = vld [vmem:[#allocation5 + $0x58] sm:$0xff]
    %v57 = vld [vmem:[#allocation5 + $0x60] sm:$0xff]
    %v58 = vld [vmem:[#allocation5 + $0x68] sm:$0xff]
    %v59 = vld [vmem:[#allocation5 + $0x70] sm:$0xff]
    %v60 = vld [vmem:[#allocation5 + $0x78] sm:$0xff]
    %v61 = vld [vmem:[%s2] sm:$0x1]
    %v63 = vlaneseq
    %v64 = vshrl.u32 %v63, 7
    %v65 = vsub.s32 0, %v64
    %v66 = vrot.slane %v61, %v65
    %68 = vmatprep.subr.mxu0 0.0
    %69 = vmatpush1.msra.mxu0 %v45
    %70 = vmatprep.subr.mxu0 0.0
    %71 = vmatpush1.msra.mxu0 %v46
    %72 = vmatprep.subr.mxu0 0.0
    %73 = vmatpush1.msra.mxu0 %v47
    %74 = vmatprep.subr.mxu0 0.0
    %75 = vmatpush1.msra.mxu0 %v48
    %76 = vmatprep.subr.mxu0 0.0
    %77 = vmatpush1.msra.mxu0 %v49
    %78 = vmatprep.subr.mxu0 0.0
    %79 = vmatpush1.msra.mxu0 %v50
    %80 = vmatprep.subr.mxu0 0.0
    %81 = vmatpush1.msra.mxu0 %v51
    %82 = vmatprep.subr.mxu0 0.0
    %83 = vmatpush1.msra.mxu0 %v52
    %84 = vmatprep.subr.mxu0 0.0
    %85 = vmatpush1.msra.mxu0 %v53
    %86 = vmatprep.subr.mxu0 0.0
    %87 = vmatpush1.msra.mxu0 %v54
    %88 = vmatprep.subr.mxu0 0.0
    %89 = vmatpush1.msra.mxu0 %v55
    %90 = vmatprep.subr.mxu0 0.0
    %91 = vmatpush1.msra.mxu0 %v56
    %92 = vmatprep.subr.mxu0 0.0
    %93 = vmatpush1.msra.mxu0 %v57
    %94 = vmatprep.subr.mxu0 0.0
    %95 = vmatpush1.msra.mxu0 %v58
    %96 = vmatprep.subr.mxu0 0.0
    %97 = vmatpush1.msra.mxu0 %v59
    %98 = vmatprep.subr.mxu0 0.0
    %99 = vmatpush1.msra.mxu0 %v60
    %100 = vmatprep.subr.mxu0 0.0
    %101 = vmatpush1.msra.mxu0 0.0
    %102 = vmatprep.subr.mxu0 0.0
    %103 = vmatpush1.msra.mxu0 0.0
    %104 = vmatprep.subr.mxu0 0.0
    %105 = vmatpush1.msra.mxu0 0.0
    %106 = vmatprep.subr.mxu0 0.0
    %107 = vmatpush1.msra.mxu0 0.0
    %108 = vmatprep.subr.mxu0 0.0
    %109 = vmatpush1.msra.mxu0 0.0
    %110 = vmatprep.subr.mxu0 0.0
    %111 = vmatpush1.msra.mxu0 0.0
    %112 = vmatprep.subr.mxu0 0.0
    %113 = vmatpush1.msra.mxu0 0.0
    %114 = vmatprep.subr.mxu0 0.0
    %115 = vmatpush1.msra.mxu0 0.0
    %116 = vmatprep.subr.mxu0 0.0
    %117 = vmatpush1.msra.mxu0 0.0
    %118 = vmatprep.subr.mxu0 0.0
    %119 = vmatpush1.msra.mxu0 0.0
    %120 = vmatprep.subr.mxu0 0.0
    %121 = vmatpush1.msra.mxu0 0.0
    %122 = vmatprep.subr.mxu0 0.0
    %123 = vmatpush1.msra.mxu0 0.0
    %124 = vmatprep.subr.mxu0 0.0
    %125 = vmatpush1.msra.mxu0 0.0
    %126 = vmatprep.subr.mxu0 0.0
    %127 = vmatpush1.msra.mxu0 0.0
    %128 = vmatprep.subr.mxu0 0.0
    %129 = vmatpush1.msra.mxu0 0.0
    %130 = vmatprep.subr.mxu0 0.0
    %131 = vmatpush1.msra.mxu0 0.0
    %132 = vmatprep.mubr.f32.mxu0 0.0
    %133 = vmatmul.mubr.f32.gmra.mrb[0].mxu0 %v43
    %v134 = vpop.f32.mrb[0].mxu0
    %v135 = vadd.f32 %v66, %v134
    %v136 = vpop.f32.mrb[0].mxu0
    %137 = vmatprep.mubr.f32.mxu0 0.0
    %138 = vmatmul.mubr.f32.gmra.mrb[0].mxu0 %v44
    %v139 = vpop.f32.mrb[0].mxu0
    %v140 = vadd.f32 %v66, %v139
    %v141 = vpop.f32.mrb[0].mxu0
    %142 = vdwg.mxu0
    %143 = vst [vmem:[#allocation7] sm:$0xff] %v135
    %144 = vst [vmem:[#allocation7 + $0x8] sm:$0xff] %v140
    // Predicated region
    $region22: #{tpu_custom_call.1} parent=1 // pred_check
      _
    $region23: #{tpu_custom_call.1} parent=1 // pred_check_branch
      %146 = sbr.rel (0) target = $region25
    $region24: #{tpu_custom_call.1} parent=1 // pred_region
      %s148 = ssub.s32 256, 256
      %149 = vsyncadd [#allocation4], %s148
      %s150 = sshll.u32 [#allocation7], 4
      %s151 = int_to_ptr.vmem [resolvable:$true] %s150
      %156 = dma.vmem_to_hbm [thread:$0]  %s151, 256, %s3, [#allocation4], 128, 128, 8
    $region25: #{tpu_custom_call.1} parent=1 // pred_fallthru
      _
    // Predicated region
    $region26: #{tpu_custom_call.1} parent=1 // pred_check
      _
    $region27: #{tpu_custom_call.1} parent=1 // pred_check_branch
      %158 = sbr.rel (0) target = $region29
    $region28: #{tpu_custom_call.1} parent=1 // pred_region
      %159 = dma.done [#allocation4], 256
    $region29: #{tpu_custom_call.1} parent=1 // pred_fallthru
      _
    %160 = vsyncpa [#allocation3], 1
    %161 = vsyncpa [#allocation6], 1
    %162 = vsyncpa [#allocation4], 1

</llo_original>
